<compile_context>
chip_gen: v5e
topology: v5e:2x2
jax: 0.10.0
libtpu: 0.0.40
codegen_flags: <defaults>
</compile_context>

<pallas_src>
import numpy as np
import jax
import jax.numpy as jnp
from jax.experimental import pallas as pl
from jax.experimental.pallas import tpu as pltpu


# ----------------------------------------------------------------------------
# Host-side (numpy) construction of the CNOT-ring unitary — mirrors the torch
# code exactly, runs once at wrapper-build time (never traced / never on-chip).
# ----------------------------------------------------------------------------
_H = np.array([[1, 1], [1, -1]], dtype=np.complex64) / np.sqrt(np.complex64(2.0))
_X = np.array([[0, 1], [1, 0]], dtype=np.complex64)
_I = np.eye(2, dtype=np.complex64)


def _get_cnot(control, target, qubits):
    swap = True
    if control > target:
        swap = False
        control, target = target, control
    diff = target - control
    if diff > 1:
        scaler = np.eye(2 ** (diff - 1), dtype=np.complex64)
        upper = np.kron(scaler, _I)
        lower = np.kron(scaler, _X)
    else:
        upper = _I
        lower = _X
    unitary = (
        np.kron(np.array([[1, 0], [0, 0]], dtype=np.complex64), upper)
        + np.kron(np.array([[0, 0], [0, 1]], dtype=np.complex64), lower)
    )
    if swap:
        swap_matrix = _H
        for _ in range(1, diff + 1):
            swap_matrix = np.kron(swap_matrix, _H)
        unitary = swap_matrix @ unitary @ swap_matrix
    if qubits > diff + 1:
        bits_before = int(control - 1)
        bits_after = int(qubits - target)
        unitary = np.kron(
            np.eye(2 ** bits_after, dtype=np.complex64),
            np.kron(unitary, np.eye(2 ** bits_before, dtype=np.complex64)),
        )
    return unitary


def make_cnot_ring_unitary(qubits: int) -> np.ndarray:
    """CNOT-ring unitary, complex64, shape (2^q, 2^q). Same math as torch spec."""
    unitary = _get_cnot(1, 2, qubits)
    for i in range(2, qubits):
        unitary = _get_cnot(i, i + 1, qubits) @ unitary
    unitary = _get_cnot(qubits, 1, qubits) @ unitary
    return unitary.astype(np.complex64)


# ----------------------------------------------------------------------------
# Small helpers
# ----------------------------------------------------------------------------
def _round_up(a: int, b: int) -> int:
    return ((a + b - 1) // b) * b


def _cdiv(a: int, b: int) -> int:
    return -(-a // b)


_BITCAST_SUPPORT = None


def _complex_bitcast_supported() -> bool:
    """Probe (once, eagerly) whether complex64<->f32 bitcast is available."""
    global _BITCAST_SUPPORT
    if _BITCAST_SUPPORT is None:
        try:
            t = jnp.array([1.0 + 2.0j, -3.0 + 0.5j], dtype=jnp.complex64)
            f = jax.lax.bitcast_convert_type(t, jnp.float32)
            back = jax.lax.bitcast_convert_type(f, jnp.complex64)
            ok = (
                f.shape == (2, 2)
                and bool(jnp.allclose(f, jnp.array([[1.0, 2.0], [-3.0, 0.5]],
                                                   jnp.float32)))
                and bool(jnp.allclose(back, t))
            )
            _BITCAST_SUPPORT = bool(ok)
        except Exception:
            _BITCAST_SUPPORT = False
    return _BITCAST_SUPPORT


def _pick_lane_tile(L0: int, D: int, lane_tile: int, B: int, budget: int) -> int:
    """Largest multiple-of-128 divisor of L0 within the byte budget / caps."""
    m = L0 // 128
    cap = max(128, (budget // (D * 4)) // 128 * 128)
    cap = min(cap, lane_tile)
    # Aim for >= 4 total grid steps so v7x's two TensorCores both get work.
    want_tiles = max(1, _cdiv(4, max(B, 1)))
    cap = min(cap, max(128, (L0 // want_tiles) // 128 * 128))
    best = 128
    for d in range(1, m + 1):
        if m % d == 0 and 128 * d <= cap:
            best = 128 * d
    return best


def _pick_row_tile(packed: int, dp: int, row_tile: int, budget: int) -> int:
    cap = max(8, (budget // (dp * 4)) // 8 * 8)
    want = max(8, _round_up(_cdiv(packed, 4), 8))  # keep >= ~4 grid steps
    return max(8, min(row_tile, cap, want))


# ----------------------------------------------------------------------------
# Pallas kernels (pure real MXU matmuls; memory-bound -> single dot per tile)
# ----------------------------------------------------------------------------
def _rows_kernel(x_ref, w_ref, y_ref):
    # x_ref: (tm, Dp) packed interleaved rows; w_ref: (Dp, Dp) block-diag
    # kron(I_P, kron(U^T, I2)), VMEM-resident; y_ref: (tm, Dp).
    y_ref[...] = jnp.dot(x_ref[...], w_ref[...], preferred_element_type=jnp.float32)


def _cols_kernel(u_ref, x_ref, y_ref):
    # u_ref: (D, D) real U (VMEM-resident); x_ref/y_ref: (1, D, TL) interleaved
    # state columns (lanes = 2*N_tile). Left multiply: no transposes anywhere.
    y_ref[0] = jnp.dot(u_ref[...], x_ref[0], preferred_element_type=jnp.float32)


# ----------------------------------------------------------------------------
# Wrapper factory
# ----------------------------------------------------------------------------
def make_cnot_ring(
    qubits: int,
    *,
    row_tile: int = 4096,
    lane_tile: int = 8192,
    fast_path_elems: int = 16384,
    block_byte_budget: int = 2 * 1024 * 1024,
):
    """Build forward(x) with x: (..., D, N) complex64, D = 2^qubits.

    Semantics match torch: y = unitary[None, :, :] @ x (broadcast over batch).
    """
    D = 2 ** qubits
    U = make_cnot_ring_unitary(qubits)  # (D, D) complex64, host numpy

    # CNOT-ring unitaries are exactly real (all factors are real matrices).
    if np.abs(U.imag).max() > 1e-6:
        raise NotImplementedError("non-real unitary not expected for CNOTRing")
    u_real = np.ascontiguousarray(U.real.astype(np.float32))  # (D, D)

    row_tile = max(8, _round_up(int(row_tile), 8))
    lane_tile = max(128, _round_up(int(lane_tile), 128))
    use_bitcast = _complex_bitcast_supported()

    # ---- complex64 <-> interleaved-f32 views (free when bitcast supported) --
    def c64_to_f32(x):  # (...,) c64 -> (..., 2) f32 with [re, im] interleave
        if use_bitcast:
            return jax.lax.bitcast_convert_type(x, jnp.float32)
        return jnp.stack([jnp.real(x), jnp.imag(x)], axis=-1)

    def f32_to_c64(x):  # (..., 2) f32 -> (...,) c64
        if use_bitcast:
            return jax.lax.bitcast_convert_type(x, jnp.complex64)
        return jax.lax.complex(x[..., 0], x[..., 1])

    # ---- weights (host-built constants) -------------------------------------
    w_cols = jnp.asarray(u_real)  # left-multiply path: plain U, K = D
    # rows path: interleaved re/im -> kron(U^T, I2), then lane-replicate
    # block-diagonally up to 128 lanes (unmasked vst, full MXU width).
    w2 = np.kron(u_real.T, np.eye(2, dtype=np.float32))  # (2D, 2D)
    two_d = 2 * D
    p_row = 128 // two_d if (two_d < 128 and 128 % two_d == 0) else 1
    dp = p_row * two_d
    w_rows = jnp.asarray(np.kron(np.eye(p_row, dtype=np.float32), w2))  # (dp, dp)
    u_c = jnp.asarray(U)  # complex64, for the fast path / reference

    # ---- left-multiply path: y[b] = U @ x[b], lanes = interleaved 2N --------
    def _forward_cols(xb, B, N):
        lanes = 2 * N
        L0 = _round_up(lanes, 128)
        tl = _pick_lane_tile(L0, D, lane_tile, B, block_byte_budget)
        xf = c64_to_f32(xb).reshape(B, D, lanes)          # free view + reshape
        if L0 != lanes:
            xf = jnp.pad(xf, ((0, 0), (0, 0), (0, L0 - lanes)))
        grid = (B, L0 // tl)
        blk = D * tl * 4
        wb = D * D * 4
        needed = 4 * blk + 2 * wb
        yf = pl.pallas_call(
            _cols_kernel,
            out_shape=jax.ShapeDtypeStruct((B, D, L0), jnp.float32),
            grid=grid,
            in_specs=[
                pl.BlockSpec((D, D), lambda b, j: (0, 0)),      # U: VMEM-resident
                pl.BlockSpec((1, D, tl), lambda b, j: (b, 0, j)),
            ],
            out_specs=pl.BlockSpec((1, D, tl), lambda b, j: (b, 0, j)),
            compiler_params=pltpu.CompilerParams(
                dimension_semantics=("parallel", "parallel"),
                vmem_limit_bytes=int(min(64 * 1024 * 1024,
                                         max(2 * needed, 16 * 1024 * 1024))),
            ),
            cost_estimate=pl.CostEstimate(
                flops=4 * B * N * D * D, transcendentals=0,
                bytes_accessed=2 * B * D * L0 * 4 + wb),
        )(w_cols, xf)
        yf = yf[:, :, :lanes].reshape(B, D, N, 2)
        return f32_to_c64(yf)  # (B, D, N) complex64

    # ---- row path (small N): packed interleaved rows, right-multiply --------
    def _forward_rows(xb, B, N):
        m0 = B * N
        xt = jnp.swapaxes(xb, -1, -2).reshape(m0, D)       # transpose (small-N only)
        xf = c64_to_f32(xt).reshape(m0, two_d)             # interleaved rows
        packed0 = _cdiv(m0, p_row)
        tm = _pick_row_tile(packed0, dp, row_tile, block_byte_budget)
        packed = _round_up(packed0, tm)
        rows_total = packed * p_row
        if rows_total != m0:
            xf = jnp.pad(xf, ((0, rows_total - m0), (0, 0)))
        xp = xf.reshape(packed, dp)                        # P rows per lane-row
        grid = (packed // tm,)
        blk = tm * dp * 4
        wb = dp * dp * 4
        needed = 4 * blk + 2 * wb
        yp = pl.pallas_call(
            _rows_kernel,
            out_shape=jax.ShapeDtypeStruct((packed, dp), jnp.float32),
            grid=grid,
            in_specs=[
                pl.BlockSpec((tm, dp), lambda i: (i, 0)),
                pl.BlockSpec((dp, dp), lambda i: (0, 0)),  # W: VMEM-resident
            ],
            out_specs=pl.BlockSpec((tm, dp), lambda i: (i, 0)),
            compiler_params=pltpu.CompilerParams(
                dimension_semantics=("parallel",),
                vmem_limit_bytes=int(min(64 * 1024 * 1024,
                                         max(2 * needed, 16 * 1024 * 1024))),
            ),
            cost_estimate=pl.CostEstimate(
                flops=4 * m0 * D * D, transcendentals=0,
                bytes_accessed=2 * packed * dp * 4 + wb),
        )(xp, w_rows)
        y = yp.reshape(rows_total, two_d)[:m0].reshape(m0, D, 2)
        yt = f32_to_c64(y)                                 # (m0, D) complex64
        return jnp.swapaxes(yt.reshape(B, N, D), -1, -2)   # (B, D, N)

    @jax.jit
    def _fwd(x):
        assert x.dtype == jnp.complex64, f"expected complex64, got {x.dtype}"
        assert x.shape[-2] == D, f"expected state dim {D}, got {x.shape[-2]}"
        lead = x.shape[:-2]
        N = int(x.shape[-1])
        B = 1
        for s in lead:
            B *= int(s)
        if B * D * N <= fast_path_elems or N == 0 or B == 0:
            # Tiny problem: XLA's fused dot beats launch + layout plumbing.
            return jnp.matmul(u_c, x)
        xb = x.reshape(B, D, N)
        lanes = 2 * N
        L0 = _round_up(lanes, 128)
        slab_bytes = D * L0 * 4
        use_cols = (
            lanes >= 128
            and L0 * 4 <= lanes * 5                      # <= 25% lane padding
            and (slab_bytes >= 256 * 1024 or B <= 64)    # keep blocks worthwhile
        )
        y = _forward_cols(xb, B, N) if use_cols else _forward_rows(xb, B, N)
        return y.reshape(*lead, D, N)

    def forward(x):
        if x.ndim == 2:  # torch broadcast: (1,D,D) @ (D,N) -> (1,D,N)
            return _fwd(x[None])
        return _fwd(x)

    forward.unitary = u_c
    return forward


# ----------------------------------------------------------------------------
# Self-test
# ----------------------------------------------------------------------------
if __name__ == "__main__":
    qubits = 5                    # state dim D = 2^5 = 32
    D = 2 ** qubits
    u_ref = jnp.asarray(make_cnot_ring_unitary(qubits))

    def rand_c(key, shape):
        kr, ki = jax.random.split(key)
        return (
            jax.random.normal(kr, shape, dtype=jnp.float32)
            + 1j * jax.random.normal(ki, shape, dtype=jnp.float32)
        ).astype(jnp.complex64)

    key = jax.random.PRNGKey(0)
    k1, k2, k3 = jax.random.split(key, 3)
    x_cols = rand_c(k1, (4, D, 64))   # 2N = 128 -> left-multiply Pallas path
    x_rows = rand_c(k2, (8, D, 8))    # small N  -> packed-row Pallas path
    x_tiny = rand_c(k3, (2, D, 8))    # tiny     -> XLA fast path

    fwd_pallas = make_cnot_ring(qubits, fast_path_elems=0)  # force Pallas paths
    fwd_default = make_cnot_ring(qubits)                     # default behavior

    ok = True
    for fwd, x in ((fwd_pallas, x_cols), (fwd_pallas, x_rows), (fwd_default, x_tiny)):
        y = jax.block_until_ready(fwd(x))
        y_ref = jnp.matmul(u_ref[None, :, :], x)   # torch: unitary[None].matmul(x)
        ok &= (y.shape == x.shape) and (y.dtype == jnp.complex64)
        ok &= bool(jnp.allclose(y, y_ref, atol=1e-4, rtol=1e-4))
    assert ok, "CNOTRing Pallas kernel mismatch vs reference"
    print("KERNEL_OK")
</pallas_src>

<mosaic_0001>
module attributes {stable_mosaic.version = 11 : i64} {
  func.func @_cols_kernel(%arg0: i32, %arg1: i32, %arg2: memref<32x32xf32, #tpu.memory_space<vmem>>, %arg3: memref<1x32x128xf32, #tpu.memory_space<vmem>>, %arg4: memref<1x32x128xf32, #tpu.memory_space<vmem>>) attributes {dimension_semantics = [#tpu.dimension_semantics<parallel>, #tpu.dimension_semantics<parallel>], iteration_bounds = array<i64: 4, 1>, scalar_prefetch = 0 : i64, scratch_operands = 0 : i64, tpu.core_type = #tpu.core_type<tc>, window_params = [{pipeline_mode = #tpu.pipeline_mode<synchronous>, transform_indices = @transform_0, window_bounds = array<i64: 32, 32>}, {transform_indices = @transform_1, window_bounds = array<i64: 1, 32, 128>}, {transform_indices = @transform_2, window_bounds = array<i64: 1, 32, 128>}]} {
    %c0 = arith.constant 0 : index
    %c0_0 = arith.constant 0 : index
    %0 = vector.load %arg2[%c0, %c0_0] : memref<32x32xf32, #tpu.memory_space<vmem>>, vector<32x32xf32>
    %c0_1 = arith.constant 0 : index
    %c0_2 = arith.constant 0 : index
    %c0_3 = arith.constant 0 : index
    %1 = vector.load %arg3[%c0_1, %c0_2, %c0_3] : memref<1x32x128xf32, #tpu.memory_space<vmem>>, vector<1x32x128xf32>
    %2 = vector.shape_cast %1 : vector<1x32x128xf32> to vector<32x128xf32>
    %cst = arith.constant dense<0.000000e+00> : vector<32x128xf32>
    %3 = tpu.matmul %0, %2, %cst {dimension_numbers = #tpu.dot_dimension_numbers<[1], [0], [0], [1], [0, 0, 1, 1], [], []>} : vector<32x32xf32>, vector<32x128xf32>, vector<32x128xf32> -> vector<32x128xf32>
    %c0_4 = arith.constant 0 : index
    %c0_5 = arith.constant 0 : index
    %c0_6 = arith.constant 0 : index
    %4 = vector.load %arg4[%c0_4, %c0_5, %c0_6] : memref<1x32x128xf32, #tpu.memory_space<vmem>>, vector<1x32x128xf32>
    %5 = vector.shape_cast %4 : vector<1x32x128xf32> to vector<32x128xf32>
    %6 = vector.shape_cast %3 : vector<32x128xf32> to vector<1x32x128xf32>
    tpu.vector_store %arg4[%c0_4, %c0_5, %c0_6], %6 {strides = array<i32>} : memref<1x32x128xf32, #tpu.memory_space<vmem>>, vector<1x32x128xf32>,
    return
  }
  func.func @transform_0(%arg0: i32, %arg1: i32) -> (i32, i32) {
    %c0_i32 = arith.constant 0 : i32
    %c0_i32_0 = arith.constant 0 : i32
    %c0_i32_1 = arith.constant 0 : i32
    return %c0_i32, %c0_i32_0 : i32, i32
  }
  func.func @transform_1(%arg0: i32, %arg1: i32) -> (i32, i32, i32) {
    %c0_i32 = arith.constant 0 : i32
    %c0_i32_0 = arith.constant 0 : i32
    return %arg0, %c0_i32, %arg1 : i32, i32, i32
  }
  func.func @transform_2(%arg0: i32, %arg1: i32) -> (i32, i32, i32) {
    %c0_i32 = arith.constant 0 : i32
    %c0_i32_0 = arith.constant 0 : i32
    return %arg0, %c0_i32, %arg1 : i32, i32, i32
  }
}

</mosaic_0001>

<llo_original>
// kernel: custom-call
$region0: #{custom-call}
  %s0 = inlined_call_operand.hbm [shape: c64[4,32,64], index: 0, kind: input, shape index: {}]
  %s1 = inlined_call_operand.vmem [shape: f32[4,32,64], index: 1, kind: output, shape index: {}]
  $region1: #{custom-call} parent=0
    #allocation0 [shape = 's32[1]{0}', space=sflag, size = 0x4, scoped, tag = 'scoped memory for custom-call']
    %2 = vsyncpa [#allocation0], 0
    %s4 = sshll.u32 %s0, 4
    %s5 = int_to_ptr.hbm [resolvable:$true] %s4
    %s6 = sshll.u32 %s1, 4
    %s7 = int_to_ptr.vmem [resolvable:$true] %s6
    %9 = dma.hbm_to_vmem [thread:$0]  %s5, 2048, %s7, [#allocation0]
    %11 = dma.done [#allocation0], 2048
    %12 = vsyncpa [#allocation0], 1

// kernel: custom-call.1
$region0: #{custom-call.1}
  %s0 = inlined_call_operand.hbm [shape: c64[4,32,64], index: 0, kind: input, shape index: {}]
  %s1 = inlined_call_operand.vmem [shape: f32[4,32,64], index: 1, kind: output, shape index: {}]
  %s2 = scalar_lea.hbm %s0, 128
  $region1: #{custom-call.1} parent=0
    #allocation0 [shape = 's32[1]{0}', space=sflag, size = 0x4, scoped, tag = 'scoped memory for custom-call.1']
    %3 = vsyncpa [#allocation0], 0
    %s5 = sshll.u32 %s2, 4
    %s6 = int_to_ptr.hbm [resolvable:$true] %s5
    %s7 = sshll.u32 %s1, 4
    %s8 = int_to_ptr.vmem [resolvable:$true] %s7
    %10 = dma.hbm_to_vmem [thread:$0]  %s6, 2048, %s8, [#allocation0]
    %12 = dma.done [#allocation0], 2048
    %13 = vsyncpa [#allocation0], 1

// kernel: custom-call.2
$region0: #{custom-call.2}
  %s0 = inlined_call_operand.vmem [shape: f32[4,32,64], index: 0, kind: input, shape index: {}]
  %s1 = inlined_call_operand.vmem [shape: f32[4,32,64], index: 1, kind: input, shape index: {}]
  %s2 = inlined_call_operand.vmem [shape: c64[4,32,64], index: 2, kind: output, shape index: {}]
  %s3 = scalar_lea.vmem %s2, 256
  %v4 = vld [vmem:[%s0] sm:$0xff]
  %5 = vst [vmem:[%s2] sm:$0xff] %v4
  %s6 = scalar_lea.vmem %s2, 8
  %s7 = scalar_lea.vmem %s0, 8
  %v8 = vld [vmem:[%s7] sm:$0xff]
  %9 = vst [vmem:[%s6] sm:$0xff] %v8
  %s10 = scalar_lea.vmem %s2, 16
  %s11 = scalar_lea.vmem %s0, 16
  %v12 = vld [vmem:[%s11] sm:$0xff]
  %13 = vst [vmem:[%s10] sm:$0xff] %v12
  %s14 = scalar_lea.vmem %s2, 24
  %s15 = scalar_lea.vmem %s0, 24
  %v16 = vld [vmem:[%s15] sm:$0xff]
  %17 = vst [vmem:[%s14] sm:$0xff] %v16
  %s18 = scalar_lea.vmem %s2, 32
  %s19 = scalar_lea.vmem %s0, 32
  %v20 = vld [vmem:[%s19] sm:$0xff]
  %21 = vst [vmem:[%s18] sm:$0xff] %v20
  %s22 = scalar_lea.vmem %s2, 40
  %s23 = scalar_lea.vmem %s0, 40
  %v24 = vld [vmem:[%s23] sm:$0xff]
  %25 = vst [vmem:[%s22] sm:$0xff] %v24
  %s26 = scalar_lea.vmem %s2, 48
  %s27 = scalar_lea.vmem %s0, 48
  %v28 = vld [vmem:[%s27] sm:$0xff]
  %29 = vst [vmem:[%s26] sm:$0xff] %v28
  %s30 = scalar_lea.vmem %s2, 56
  %s31 = scalar_lea.vmem %s0, 56
  %v32 = vld [vmem:[%s31] sm:$0xff]
  %33 = vst [vmem:[%s30] sm:$0xff] %v32
  %s34 = scalar_lea.vmem %s2, 64
  %s35 = scalar_lea.vmem %s0, 64
  %v36 = vld [vmem:[%s35] sm:$0xff]
  %37 = vst [vmem:[%s34] sm:$0xff] %v36
  %s38 = scalar_lea.vmem %s2, 72
  %s39 = scalar_lea.vmem %s0, 72
  %v40 = vld [vmem:[%s39] sm:$0xff]
  %41 = vst [vmem:[%s38] sm:$0xff] %v40
  %s42 = scalar_lea.vmem %s2, 80
  %s43 = scalar_lea.vmem %s0, 80
  %v44 = vld [vmem:[%s43] sm:$0xff]
  %45 = vst [vmem:[%s42] sm:$0xff] %v44
  %s46 = scalar_lea.vmem %s2, 88
  %s47 = scalar_lea.vmem %s0, 88
  %v48 = vld [vmem:[%s47] sm:$0xff]
  %49 = vst [vmem:[%s46] sm:$0xff] %v48
  %s50 = scalar_lea.vmem %s2, 96
  %s51 = scalar_lea.vmem %s0, 96
  %v52 = vld [vmem:[%s51] sm:$0xff]
  %53 = vst [vmem:[%s50] sm:$0xff] %v52
  %s54 = scalar_lea.vmem %s2, 104
  %s55 = scalar_lea.vmem %s0, 104
  %v56 = vld [vmem:[%s55] sm:$0xff]
  %57 = vst [vmem:[%s54] sm:$0xff] %v56
  %s58 = scalar_lea.vmem %s2, 112
  %s59 = scalar_lea.vmem %s0, 112
  %v60 = vld [vmem:[%s59] sm:$0xff]
  %61 = vst [vmem:[%s58] sm:$0xff] %v60
  %s62 = scalar_lea.vmem %s2, 120
  %s63 = scalar_lea.vmem %s0, 120
  %v64 = vld [vmem:[%s63] sm:$0xff]
  %65 = vst [vmem:[%s62] sm:$0xff] %v64
  %s66 = scalar_lea.vmem %s2, 128
  %s67 = scalar_lea.vmem %s0, 128
  %v68 = vld [vmem:[%s67] sm:$0xff]
  %69 = vst [vmem:[%s66] sm:$0xff] %v68
  %s70 = scalar_lea.vmem %s2, 136
  %s71 = scalar_lea.vmem %s0, 136
  %v72 = vld [vmem:[%s71] sm:$0xff]
  %73 = vst [vmem:[%s70] sm:$0xff] %v72
  %s74 = scalar_lea.vmem %s2, 144
  %s75 = scalar_lea.vmem %s0, 144
  %v76 = vld [vmem:[%s75] sm:$0xff]
  %77 = vst [vmem:[%s74] sm:$0xff] %v76
  %s78 = scalar_lea.vmem %s2, 152
  %s79 = scalar_lea.vmem %s0, 152
  %v80 = vld [vmem:[%s79] sm:$0xff]
  %81 = vst [vmem:[%s78] sm:$0xff] %v80
  %s82 = scalar_lea.vmem %s2, 160
  %s83 = scalar_lea.vmem %s0, 160
  %v84 = vld [vmem:[%s83] sm:$0xff]
  %85 = vst [vmem:[%s82] sm:$0xff] %v84
  %s86 = scalar_lea.vmem %s2, 168
  %s87 = scalar_lea.vmem %s0, 168
  %v88 = vld [vmem:[%s87] sm:$0xff]
  %89 = vst [vmem:[%s86] sm:$0xff] %v88
  %s90 = scalar_lea.vmem %s2, 176
  %s91 = scalar_lea.vmem %s0, 176
  %v92 = vld [vmem:[%s91] sm:$0xff]
  %93 = vst [vmem:[%s90] sm:$0xff] %v92
  %s94 = scalar_lea.vmem %s2, 184
  %s95 = scalar_lea.vmem %s0, 184
  %v96 = vld [vmem:[%s95] sm:$0xff]
  %97 = vst [vmem:[%s94] sm:$0xff] %v96
  %s98 = scalar_lea.vmem %s2, 192
  %s99 = scalar_lea.vmem %s0, 192
  %v100 = vld [vmem:[%s99] sm:$0xff]
  %101 = vst [vmem:[%s98] sm:$0xff] %v100
  %s102 = scalar_lea.vmem %s2, 200
  %s103 = scalar_lea.vmem %s0, 200
  %v104 = vld [vmem:[%s103] sm:$0xff]
  %105 = vst [vmem:[%s102] sm:$0xff] %v104
  %s106 = scalar_lea.vmem %s2, 208
  %s107 = scalar_lea.vmem %s0, 208
  %v108 = vld [vmem:[%s107] sm:$0xff]
  %109 = vst [vmem:[%s106] sm:$0xff] %v108
  %s110 = scalar_lea.vmem %s2, 216
  %s111 = scalar_lea.vmem %s0, 216
  %v112 = vld [vmem:[%s111] sm:$0xff]
  %113 = vst [vmem:[%s110] sm:$0xff] %v112
  %s114 = scalar_lea.vmem %s2, 224
  %s115 = scalar_lea.vmem %s0, 224
  %v116 = vld [vmem:[%s115] sm:$0xff]
  %117 = vst [vmem:[%s114] sm:$0xff] %v116
  %s118 = scalar_lea.vmem %s2, 232
  %s119 = scalar_lea.vmem %s0, 232
  %v120 = vld [vmem:[%s119] sm:$0xff]
  %121 = vst [vmem:[%s118] sm:$0xff] %v120
  %s122 = scalar_lea.vmem %s2, 240
  %s123 = scalar_lea.vmem %s0, 240
  %v124 = vld [vmem:[%s123] sm:$0xff]
  %125 = vst [vmem:[%s122] sm:$0xff] %v124
  %s126 = scalar_lea.vmem %s2, 248
  %s127 = scalar_lea.vmem %s0, 248
  %v128 = vld [vmem:[%s127] sm:$0xff]
  %129 = vst [vmem:[%s126] sm:$0xff] %v128
  %v130 = vld [vmem:[%s1] sm:$0xff]
  %131 = vst [vmem:[%s3] sm:$0xff] %v130
  %s132 = scalar_lea.vmem %s3, 8
  %s133 = scalar_lea.vmem %s1, 8
  %v134 = vld [vmem:[%s133] sm:$0xff]
  %135 = vst [vmem:[%s132] sm:$0xff] %v134
  %s136 = scalar_lea.vmem %s3, 16
  %s137 = scalar_lea.vmem %s1, 16
  %v138 = vld [vmem:[%s137] sm:$0xff]
  %139 = vst [vmem:[%s136] sm:$0xff] %v138
  %s140 = scalar_lea.vmem %s3, 24
  %s141 = scalar_lea.vmem %s1, 24
  %v142 = vld [vmem:[%s141] sm:$0xff]
  %143 = vst [vmem:[%s140] sm:$0xff] %v142
  %s144 = scalar_lea.vmem %s3, 32
  %s145 = scalar_lea.vmem %s1, 32
  %v146 = vld [vmem:[%s145] sm:$0xff]
  %147 = vst [vmem:[%s144] sm:$0xff] %v146
  %s148 = scalar_lea.vmem %s3, 40
  %s149 = scalar_lea.vmem %s1, 40
  %v150 = vld [vmem:[%s149] sm:$0xff]
  %151 = vst [vmem:[%s148] sm:$0xff] %v150
  %s152 = scalar_lea.vmem %s3, 48
  %s153 = scalar_lea.vmem %s1, 48
  %v154 = vld [vmem:[%s153] sm:$0xff]
  %155 = vst [vmem:[%s152] sm:$0xff] %v154
  %s156 = scalar_lea.vmem %s3, 56
  %s157 = scalar_lea.vmem %s1, 56
  %v158 = vld [vmem:[%s157] sm:$0xff]
  %159 = vst [vmem:[%s156] sm:$0xff] %v158
  %s160 = scalar_lea.vmem %s3, 64
  %s161 = scalar_lea.vmem %s1, 64
  %v162 = vld [vmem:[%s161] sm:$0xff]
  %163 = vst [vmem:[%s160] sm:$0xff] %v162
  %s164 = scalar_lea.vmem %s3, 72
  %s165 = scalar_lea.vmem %s1, 72
  %v166 = vld [vmem:[%s165] sm:$0xff]
  %167 = vst [vmem:[%s164] sm:$0xff] %v166
  %s168 = scalar_lea.vmem %s3, 80
  %s169 = scalar_lea.vmem %s1, 80
  %v170 = vld [vmem:[%s169] sm:$0xff]
  %171 = vst [vmem:[%s168] sm:$0xff] %v170
  %s172 = scalar_lea.vmem %s3, 88
  %s173 = scalar_lea.vmem %s1, 88
  %v174 = vld [vmem:[%s173] sm:$0xff]
  %175 = vst [vmem:[%s172] sm:$0xff] %v174
  %s176 = scalar_lea.vmem %s3, 96
  %s177 = scalar_lea.vmem %s1, 96
  %v178 = vld [vmem:[%s177] sm:$0xff]
  %179 = vst [vmem:[%s176] sm:$0xff] %v178
  %s180 = scalar_lea.vmem %s3, 104
  %s181 = scalar_lea.vmem %s1, 104
  %v182 = vld [vmem:[%s181] sm:$0xff]
  %183 = vst [vmem:[%s180] sm:$0xff] %v182
  %s184 = scalar_lea.vmem %s3, 112
  %s185 = scalar_lea.vmem %s1, 112
  %v186 = vld [vmem:[%s185] sm:$0xff]
  %187 = vst [vmem:[%s184] sm:$0xff] %v186
  %s188 = scalar_lea.vmem %s3, 120
  %s189 = scalar_lea.vmem %s1, 120
  %v190 = vld [vmem:[%s189] sm:$0xff]
  %191 = vst [vmem:[%s188] sm:$0xff] %v190
  %s192 = scalar_lea.vmem %s3, 128
  %s193 = scalar_lea.vmem %s1, 128
  %v194 = vld [vmem:[%s193] sm:$0xff]
  %195 = vst [vmem:[%s192] sm:$0xff] %v194
  %s196 = scalar_lea.vmem %s3, 136
  %s197 = scalar_lea.vmem %s1, 136
  %v198 = vld [vmem:[%s197] sm:$0xff]
  %199 = vst [vmem:[%s196] sm:$0xff] %v198
  %s200 = scalar_lea.vmem %s3, 144
  %s201 = scalar_lea.vmem %s1, 144
  %v202 = vld [vmem:[%s201] sm:$0xff]
  %203 = vst [vmem:[%s200] sm:$0xff] %v202
  %s204 = scalar_lea.vmem %s3, 152
  %s205 = scalar_lea.vmem %s1, 152
  %v206 = vld [vmem:[%s205] sm:$0xff]
  %207 = vst [vmem:[%s204] sm:$0xff] %v206
  %s208 = scalar_lea.vmem %s3, 160
  %s209 = scalar_lea.vmem %s1, 160
  %v210 = vld [vmem:[%s209] sm:$0xff]
  %211 = vst [vmem:[%s208] sm:$0xff] %v210
  %s212 = scalar_lea.vmem %s3, 168
  %s213 = scalar_lea.vmem %s1, 168
  %v214 = vld [vmem:[%s213] sm:$0xff]
  %215 = vst [vmem:[%s212] sm:$0xff] %v214
  %s216 = scalar_lea.vmem %s3, 176
  %s217 = scalar_lea.vmem %s1, 176
  %v218 = vld [vmem:[%s217] sm:$0xff]
  %219 = vst [vmem:[%s216] sm:$0xff] %v218
  %s220 = scalar_lea.vmem %s3, 184
  %s221 = scalar_lea.vmem %s1, 184
  %v222 = vld [vmem:[%s221] sm:$0xff]
  %223 = vst [vmem:[%s220] sm:$0xff] %v222
  %s224 = scalar_lea.vmem %s3, 192
  %s225 = scalar_lea.vmem %s1, 192
  %v226 = vld [vmem:[%s225] sm:$0xff]
  %227 = vst [vmem:[%s224] sm:$0xff] %v226
  %s228 = scalar_lea.vmem %s3, 200
  %s229 = scalar_lea.vmem %s1, 200
  %v230 = vld [vmem:[%s229] sm:$0xff]
  %231 = vst [vmem:[%s228] sm:$0xff] %v230
  %s232 = scalar_lea.vmem %s3, 208
  %s233 = scalar_lea.vmem %s1, 208
  %v234 = vld [vmem:[%s233] sm:$0xff]
  %235 = vst [vmem:[%s232] sm:$0xff] %v234
  %s236 = scalar_lea.vmem %s3, 216
  %s237 = scalar_lea.vmem %s1, 216
  %v238 = vld [vmem:[%s237] sm:$0xff]
  %239 = vst [vmem:[%s236] sm:$0xff] %v238
  %s240 = scalar_lea.vmem %s3, 224
  %s241 = scalar_lea.vmem %s1, 224
  %v242 = vld [vmem:[%s241] sm:$0xff]
  %243 = vst [vmem:[%s240] sm:$0xff] %v242
  %s244 = scalar_lea.vmem %s3, 232
  %s245 = scalar_lea.vmem %s1, 232
  %v246 = vld [vmem:[%s245] sm:$0xff]
  %247 = vst [vmem:[%s244] sm:$0xff] %v246
  %s248 = scalar_lea.vmem %s3, 240
  %s249 = scalar_lea.vmem %s1, 240
  %v250 = vld [vmem:[%s249] sm:$0xff]
  %251 = vst [vmem:[%s248] sm:$0xff] %v250
  %s252 = scalar_lea.vmem %s3, 248
  %s253 = scalar_lea.vmem %s1, 248
  %v254 = vld [vmem:[%s253] sm:$0xff]
  %255 = vst [vmem:[%s252] sm:$0xff] %v254

// kernel: _fwd.1
$region0: #{_fwd.1}
  #allocation0 [shape = 'u32[]', space=smem, size = 0x4, offset = 0x4, fixed_abs, tag = 'smem constant byte address 0x4 - core index']
  #allocation1 [shape = 'u32[72,128]{1,0:T(1,128)}', space=vmem, size = 0x9000, scoped, tag = 'internal scratch']
  %s0 = inlined_call_operand.vmem [shape: f32[32,32], index: 0, kind: input, shape index: {}]
  %s1 = inlined_call_operand.vmem [shape: f32[4,32,128], index: 1, kind: input, shape index: {}]
  %s2 = inlined_call_operand.vmem [shape: f32[4,32,128], index: 2, kind: output, shape index: {}]
  %s3 = sld [smem:[#allocation0]]
  $region41: #{_fwd.1} parent=0
    _
  %s5 = ssub.s32 1, %s3
  %s6 = scalar_select 0, %s5, %s3
  loop: start=0, step=1, limit=6
  $region2: #{_fwd.1} parent=0 // loop_pre_header
    _
  $region3: #{_fwd.1} parent=0 // loop_header
    %s8 = sphi 0, %s12
    %p9 = scmp.ge.s32.totalorder %s8, 6
    %s15 = sphi 0, %s27
    %s16 = sphi 0, %s23
    %s17 = sphi 0, %s15
    %s18 = sphi 0, %s16
    %s19 = sphi 0, %s17
    %s20 = sphi 0, %s18
    %s28 = sphi 0, %s28
    %s30 = sphi 0, %s28
    %s31 = sphi 0, %s30
    %s45 = sphi 0, %s31
    %s53 = sphi 0, %s55
    %s56 = sphi 0, %s53
    %s57 = sphi 0, %s56
    %s73 = sphi 0, %s57
    %s81 = sphi 0, %s83
    %s84 = sphi 0, %s81
    %s85 = sphi 0, %s84
    %s101 = sphi 0, %s85
  $region4: #{_fwd.1} parent=0 // loop_header_branch
    %11 = sbr.rel (%p9) target = $region8
  $region5: #{_fwd.1} parent=0 // loop_body
    %s13 = ssub.s32 %s8, 1
    %s14 = ssub.s32 %s8, 2
    %s21 = sadd.s32 1, %s16
    %p22 = scmp.ge.s32.totalorder %s21, 1
    %s23 = scalar_select %p22, 0, %s21
    %s24 = sadd.s32 1, %s15
    %s25 = scalar_select %p22, %s24, %s15
    %p26 = scmp.ge.s32.totalorder %s25, 4
    %s27 = scalar_select %p26, 0, %s25
    %s29 = sadd.s32 %s28, 1
    %p32 = scmp.eq.s32.totalorder %s8, 3
    %p33 = scmp.ne.s32.totalorder %s28, %s30
    %p34 = scmp.eq.s32.totalorder %s8, 0
    %p35 = por %p33, %p34
    %p36 = scmp.ne.s32.totalorder %s28, %s30
    %p37 = scmp.eq.s32.totalorder %s13, 3
    %p38 = por %p36, %p37
    %p39 = scmp.ne.s32.totalorder %s30, %s31
    %p40 = scmp.eq.s32.totalorder %s13, 0
    %p41 = por %p39, %p40
    %p42 = scmp.ne.s32.totalorder %s30, %s31
    %p43 = scmp.eq.s32.totalorder %s14, 3
    %p44 = por %p42, %p43
    %p46 = scmp.ne.s32.totalorder %s31, %s45
    %p47 = scmp.eq.s32.totalorder %s14, 0
    %p48 = por %p46, %p47
    %s49 = ssub.s32 %s15, %s27
    %s50 = ssub.s32 %s16, %s23
    %s51 = sor.u32 %s49, %s50
    %p52 = scmp.eq.s32.totalorder %s51, 0
    %s54 = sadd.s32 %s53, 1
    %s55 = scalar_select %p52, %s53, %s54
    %p58 = pneg %p52
    %p59 = scmp.eq.s32.totalorder %s8, 3
    %p60 = por %p58, %p59
    %p61 = scmp.ne.s32.totalorder %s53, %s56
    %p62 = scmp.eq.s32.totalorder %s8, 0
    %p63 = por %p61, %p62
    %p64 = scmp.ne.s32.totalorder %s53, %s56
    %p65 = scmp.eq.s32.totalorder %s13, 3
    %p66 = por %p64, %p65
    %p67 = scmp.ne.s32.totalorder %s56, %s57
    %p68 = scmp.eq.s32.totalorder %s13, 0
    %p69 = por %p67, %p68
    %p70 = scmp.ne.s32.totalorder %s56, %s57
    %p71 = scmp.eq.s32.totalorder %s14, 3
    %p72 = por %p70, %p71
    %p74 = scmp.ne.s32.totalorder %s57, %s73
    %p75 = scmp.eq.s32.totalorder %s14, 0
    %p76 = por %p74, %p75
    %s77 = ssub.s32 %s15, %s27
    %s78 = ssub.s32 %s16, %s23
    %s79 = sor.u32 %s77, %s78
    %p80 = scmp.eq.s32.totalorder %s79, 0
    %s82 = sadd.s32 %s81, 1
    %s83 = scalar_select %p80, %s81, %s82
    %p86 = pneg %p80
    %p87 = scmp.eq.s32.totalorder %s8, 3
    %p88 = por %p86, %p87
    %p89 = scmp.ne.s32.totalorder %s81, %s84
    %p90 = scmp.eq.s32.totalorder %s8, 0
    %p91 = por %p89, %p90
    %p92 = scmp.ne.s32.totalorder %s81, %s84
    %p93 = scmp.eq.s32.totalorder %s13, 3
    %p94 = por %p92, %p93
    %p95 = scmp.ne.s32.totalorder %s84, %s85
    %p96 = scmp.eq.s32.totalorder %s13, 0
    %p97 = por %p95, %p96
    %p98 = scmp.ne.s32.totalorder %s84, %s85
    %p99 = scmp.eq.s32.totalorder %s14, 3
    %p100 = por %p98, %p99
    %p102 = scmp.ne.s32.totalorder %s85, %s101
    %p103 = scmp.eq.s32.totalorder %s14, 0
    %p104 = por %p102, %p103
    %p105 = scmp.le.s32.totalorder 1, %s8
    %p106 = scmp.lt.s32.totalorder %s8, 5
    %p107 = pnand %p105, %p106
    %p108 = pneg %p107
    // Predicated region
    $region9: #{_fwd.1} parent=5 // pred_check
      _
    $region10: #{_fwd.1} parent=5 // pred_check_branch
      %110 = sbr.rel (%p107) target = $region12
    $region11: #{_fwd.1} parent=5 // pred_region
      %s111 = ssub.s32 %s8, 1
      // Predicated region
      $region13: #{_fwd.1} parent=11 // pred_check
        %p112 = pneg %p41
      $region14: #{_fwd.1} parent=11 // pred_check_branch
        %114 = sbr.rel (%p112) target = $region16
      $region15: #{_fwd.1} parent=11 // pred_region
        _
      $region16: #{_fwd.1} parent=11 // pred_fallthru
        _
    $region12: #{_fwd.1} parent=5 // pred_fallthru
      _
    %p115 = scmp.lt.s32.totalorder %s8, 4
    // Predicated region
    $region17: #{_fwd.1} parent=5 // pred_check
      %p116 = pneg %p115
    $region18: #{_fwd.1} parent=5 // pred_check_branch
      %118 = sbr.rel (%p116) target = $region20
    $region19: #{_fwd.1} parent=5 // pred_region
      // Predicated region
      $region21: #{_fwd.1} parent=19 // pred_check
        %p119 = pneg %p63
      $region22: #{_fwd.1} parent=19 // pred_check_branch
        %121 = sbr.rel (%p119) target = $region24
      $region23: #{_fwd.1} parent=19 // pred_region
        %p122 = scmp.lt.s32.totalorder %s15, 3
        %s123 = scalar_select %p122, %s15, 3
        %p124 = scmp.lt.s32.totalorder %s16, 0
        %s125 = scalar_select %p124, %s16, 0
        %s126 = smul.addr %s123, 4
        %s127 = sadd.s32 %s125, %s126
        %s128 = smul.addr %s127, 8
        %s129 = scalar_lea.vmem %s1, %s128
      $region24: #{_fwd.1} parent=19 // pred_fallthru
        _
    $region20: #{_fwd.1} parent=5 // pred_fallthru
      _
    %p130 = scmp.le.s32.totalorder 1, %s8
    %p131 = scmp.lt.s32.totalorder %s8, 5
    %p132 = pnand %p130, %p131
    %p133 = pneg %p132
    // Predicated region
    $region25: #{_fwd.1} parent=5 // pred_check
      _
    $region26: #{_fwd.1} parent=5 // pred_check_branch
      %135 = sbr.rel (%p132) target = $region28
    $region27: #{_fwd.1} parent=5 // pred_region
      %s136 = ssub.s32 %s8, 1
      %p137 = pneg %p41
      %p138 = pneg %p38
      %p139 = scmp.lt.s32.totalorder %s17, 3
      %s140 = scalar_select %p139, %s17, 3
      %p141 = scmp.lt.s32.totalorder %s18, 0
      %s142 = scalar_select %p141, %s18, 0
      %s143 = smul.addr %s140, 4
      %s144 = sadd.s32 %s142, %s143
      %s145 = smul.addr %s144, 8
      %s146 = scalar_lea.vmem %s1, %s145
      %p147 = pneg %p69
      %p148 = pneg %p66
      %p149 = pneg %p97
      %p150 = pneg %p94
      %p151 = scmp.lt.s32.totalorder %s17, 3
      %s152 = scalar_select %p151, %s17, 3
      %p153 = scmp.lt.s32.totalorder %s18, 0
      %s154 = scalar_select %p153, %s18, 0
      %s155 = smul.addr %s152, 4
      %s156 = sadd.s32 %s154, %s155
      %s157 = smul.addr %s156, 8
      %s158 = scalar_lea.vmem %s2, %s157
      %p159 = scmp.lt.s32.totalorder %s17, 3
      %s160 = scalar_select %p159, %s17, 3
      %p161 = scmp.lt.s32.totalorder %s18, 0
      %s162 = scalar_select %p161, %s18, 0
      %s163 = smul.addr %s160, 4
      %s164 = sadd.s32 %s162, %s163
      %s165 = smul.addr %s164, 8
      %s166 = scalar_lea.vmem %s1, %s165
      %p167 = scmp.lt.s32.totalorder %s17, 3
      %s168 = scalar_select %p167, %s17, 3
      %p169 = scmp.lt.s32.totalorder %s18, 0
      %s170 = scalar_select %p169, %s18, 0
      %s171 = smul.addr %s168, 4
      %s172 = sadd.s32 %s170, %s171
      %s173 = smul.addr %s172, 8
      %s174 = scalar_lea.vmem %s2, %s173
      %v175 = vld [vmem:[%s0] sm:$0xff]
      %v176 = vld [vmem:[%s0 + $0x8] sm:$0xff]
      %v177 = vld [vmem:[%s0 + $0x10] sm:$0xff]
      %v178 = vld [vmem:[%s0 + $0x18] sm:$0xff]
      %v179 = vld [vmem:[%s166] sm:$0xff]
      %v180 = vld [vmem:[%s166 + $0x8] sm:$0xff]
      %v181 = vld [vmem:[%s166 + $0x10] sm:$0xff]
      %v182 = vld [vmem:[%s166 + $0x18] sm:$0xff]
      %vm183 = vcmask 261120
      %v185 = vsel %vm183, %v175, 0
      %v188 = vsel %vm183, %v176, 0
      %v191 = vsel %vm183, %v177, 0
      %v194 = vsel %vm183, %v178, 0
      %196 = vmatpush.msra.mxu0 0.0
      %197 = vmatpush.msra.mxu0 0.0
      %198 = vmatpush.msra.mxu0 0.0
      %199 = vmatpush.msra.mxu0 0.0
      %200 = vmatpush.msra.mxu0 0.0
      %201 = vmatpush.msra.mxu0 0.0
      %202 = vmatpush.msra.mxu0 0.0
      %203 = vmatpush.msra.mxu0 0.0
      %204 = vmatpush.msra.mxu0 0.0
      %205 = vmatpush.msra.mxu0 0.0
      %206 = vmatpush.msra.mxu0 0.0
      %207 = vmatpush.msra.mxu0 0.0
      %208 = vmatpush.msra.mxu0 %v182
      %209 = vmatpush.msra.mxu0 %v181
      %210 = vmatpush.msra.mxu0 %v180
      %211 = vmatpush.msra.mxu0 %v179
      %212 = vmatmul.f32.gmra.mxu0 %v185
      %v213 = vpop.f32.mrf.mxu0
      %v214 = vadd.f32 0.0, %v213
      %215 = vmatmul.f32.gmra.mxu0 %v188
      %v216 = vpop.f32.mrf.mxu0
      %v217 = vadd.f32 0.0, %v216
      %218 = vmatmul.f32.gmra.mxu0 %v191
      %v219 = vpop.f32.mrf.mxu0
      %v220 = vadd.f32 0.0, %v219
      %221 = vmatmul.f32.gmra.mxu0 %v194
      %v222 = vpop.f32.mrf.mxu0
      %v223 = vadd.f32 0.0, %v222
      %224 = vdwg.mxu0
      %225 = vst [vmem:[%s174] sm:$0xff] %v214
      %226 = vst [vmem:[%s174 + $0x8] sm:$0xff] %v217
      %227 = vst [vmem:[%s174 + $0x10] sm:$0xff] %v220
      %228 = vst [vmem:[%s174 + $0x18] sm:$0xff] %v223
      %p229 = scmp.lt.s32.totalorder %s17, 3
      %s230 = scalar_select %p229, %s17, 3
      %p231 = scmp.lt.s32.totalorder %s18, 0
      %s232 = scalar_select %p231, %s18, 0
      %s233 = smul.addr %s230, 4
      %s234 = sadd.s32 %s232, %s233
      %s235 = smul.addr %s234, 8
      %s236 = scalar_lea.vmem %s2, %s235
      // Predicated region
      $region29: #{_fwd.1} parent=27 // pred_check
        %p237 = pneg %p94
      $region30: #{_fwd.1} parent=27 // pred_check_branch
        %239 = sbr.rel (%p237) target = $region32
      $region31: #{_fwd.1} parent=27 // pred_region
        _
      $region32: #{_fwd.1} parent=27 // pred_fallthru
        _
    $region28: #{_fwd.1} parent=5 // pred_fallthru
      _
    %p240 = scmp.le.s32.totalorder 2, %s8
    // Predicated region
    $region33: #{_fwd.1} parent=5 // pred_check
      %p241 = pneg %p240
    $region34: #{_fwd.1} parent=5 // pred_check_branch
      %243 = sbr.rel (%p241) target = $region36
    $region35: #{_fwd.1} parent=5 // pred_region
      %s244 = ssub.s32 %s8, 2
      // Predicated region
      $region37: #{_fwd.1} parent=35 // pred_check
        %p245 = pneg %p100
      $region38: #{_fwd.1} parent=35 // pred_check_branch
        %247 = sbr.rel (%p245) target = $region40
      $region39: #{_fwd.1} parent=35 // pred_region
        %p248 = scmp.lt.s32.totalorder %s19, 3
        %s249 = scalar_select %p248, %s19, 3
        %p250 = scmp.lt.s32.totalorder %s20, 0
        %s251 = scalar_select %p250, %s20, 0
        %s252 = smul.addr %s249, 4
        %s253 = sadd.s32 %s251, %s252
        %s254 = smul.addr %s253, 8
        %s255 = scalar_lea.vmem %s2, %s254
      $region40: #{_fwd.1} parent=35 // pred_fallthru
        _
    $region36: #{_fwd.1} parent=5 // pred_fallthru
      _
  $region6: #{_fwd.1} parent=0 // loop_footer
    %s12 = sadd.s32 1, %s8
  $region7: #{_fwd.1} parent=0 // loop_footer_branch
    %7 = sbr.rel target = $region3
  $region8: #{_fwd.1} parent=0 // loop_exit
    _

</llo_original>
